<compile_context>
chip_gen: v5e
topology: v5e:2x2
jax: 0.10.0
libtpu: 0.0.40
codegen_flags: <defaults>
</compile_context>

<pallas_src>
import functools
import math

import numpy as np

import jax
import jax.numpy as jnp
from jax.experimental import pallas as pl
from jax.experimental.pallas import tpu as pltpu


_LANE = 128  # TPU lane width / MXU tile edge


def _round_up(x, m):
    return ((x + m - 1) // m) * m


@functools.lru_cache(maxsize=None)
def _vmem_limit_bytes():
    """~3/4 of physical VMEM (v5e/v6e: 128 MiB, v7x: 64 MiB); 64 MiB fallback."""
    try:
        cap = int(pltpu.get_tpu_info().vmem_capacity_bytes)
        return max(32 * 1024 * 1024, min(cap * 3 // 4, 100 * 1024 * 1024))
    except Exception:
        return 64 * 1024 * 1024


def _pick_tile(dim, candidates):
    for t in candidates:
        if dim % t == 0:
            return t
    return dim  # dims here are always multiples of 128


def _pick_row_tile(m):
    # Largest row tile that still leaves an i-grid of >= 2 (the only megacore
    # lever on v7x, since the j grid is typically length 1).  m == 128
    # unavoidably gives a single-step i grid.
    for t in (512, 256, 128):
        if m % t == 0 and m // t >= 2:
            return t
    return _pick_tile(m, (512, 256, 128))


# ---------------------------------------------------------------------------
# Kernel factory
# ---------------------------------------------------------------------------

def _make_matmul_kernel(*, tk, b_resident, fuse_bias_relu, use_acc_scratch):
    """Builds the body for o = [relu](a @ b [+ bias]).

    Grid is (i, j, k) with the k reduction innermost ("arbitrary").  The
    accumulator is either a f32 VMEM scratch (bf16 outputs) or the resident
    f32 output block itself (saves the scratch + finalize copy).
    """

    def kernel(*refs):
        if fuse_bias_relu:
            a_ref, b_ref, bias_ref = refs[0], refs[1], refs[2]
            rest = refs[3:]
        else:
            a_ref, b_ref = refs[0], refs[1]
            bias_ref = None
            rest = refs[2:]
        if use_acc_scratch:
            o_ref, acc_ref = rest
        else:
            (o_ref,) = rest
            acc_ref = o_ref  # accumulate in place: f32 output block is resident

        kk = pl.program_id(2)

        @pl.when(kk == 0)
        def _init():
            acc_ref[...] = jnp.zeros_like(acc_ref)

        if b_resident:
            # Full-K resident B block: slice the current k-chunk out of VMEM.
            start = pl.multiple_of(kk * tk, tk)
            b_blk = b_ref[pl.ds(start, tk), :]
        else:
            b_blk = b_ref[...]

        acc_ref[...] += jnp.dot(a_ref[...], b_blk,
                                preferred_element_type=jnp.float32)

        if fuse_bias_relu:
            @pl.when(kk == pl.num_programs(2) - 1)
            def _finalize():
                o_ref[...] = jnp.maximum(
                    acc_ref[...] + bias_ref[...], 0.0).astype(o_ref.dtype)
        elif use_acc_scratch:
            @pl.when(kk == pl.num_programs(2) - 1)
            def _finalize():
                o_ref[...] = acc_ref[...].astype(o_ref.dtype)
        # else: f32 output already accumulated in place; nothing to finalize.

    return kernel


# ---------------------------------------------------------------------------
# pallas_call wrapper (inputs already padded to multiples of 128)
# ---------------------------------------------------------------------------

def _tiled_matmul(a, b, bias=None, *, out_dtype=jnp.float32):
    """o = a @ b   (or relu(a @ b + bias) when bias is given), tiled for TPU.

    All dims must already be padded to multiples of 128 so every block is
    lane-dense (no masked vst.msk stores) and MXU-aligned.
    """
    m, k = a.shape
    k2, n = b.shape
    assert k == k2 and m % _LANE == 0 and n % _LANE == 0 and k % _LANE == 0

    tm = _pick_row_tile(m)
    tn = _pick_tile(n, (512, 256, 128))
    tk = _pick_tile(k, (1024, 512, 256, 128))
    grid = (m // tm, n // tn, k // tk)

    vmem_limit = _vmem_limit_bytes()
    # Keep the resident (full-K) B block plus its double buffer well under the
    # VMEM budget; the adj tile + output tile double buffers need the rest.
    b_resident_bytes = 2 * k * tn * b.dtype.itemsize
    b_resident = b_resident_bytes <= vmem_limit // 3

    fuse_bias_relu = bias is not None
    use_acc_scratch = np.dtype(out_dtype) != np.dtype(np.float32)

    if b_resident:
        b_spec = pl.BlockSpec((k, tn), lambda i, j, kk: (0, j))
    else:
        b_spec = pl.BlockSpec((tk, tn), lambda i, j, kk: (kk, j))

    in_specs = [pl.BlockSpec((tm, tk), lambda i, j, kk: (i, kk)), b_spec]
    args = [a, b]
    if fuse_bias_relu:
        in_specs.append(pl.BlockSpec((1, tn), lambda i, j, kk: (0, j)))
        args.append(bias)

    scratch_shapes = ([pltpu.VMEM((tm, tn), jnp.float32)]
                      if use_acc_scratch else [])

    kernel = _make_matmul_kernel(tk=tk, b_resident=b_resident,
                                 fuse_bias_relu=fuse_bias_relu,
                                 use_acc_scratch=use_acc_scratch)

    bytes_accessed = (m * k * a.dtype.itemsize + k * n * b.dtype.itemsize
                      + m * n * np.dtype(out_dtype).itemsize)
    if fuse_bias_relu:
        bytes_accessed += n * bias.dtype.itemsize

    return pl.pallas_call(
        kernel,
        out_shape=jax.ShapeDtypeStruct((m, n), out_dtype),
        grid_spec=pltpu.PrefetchScalarGridSpec(
            num_scalar_prefetch=0,
            grid=grid,
            in_specs=in_specs,
            out_specs=pl.BlockSpec((tm, tn), lambda i, j, kk: (i, j)),
            scratch_shapes=scratch_shapes,
        ),
        compiler_params=pltpu.CompilerParams(
            dimension_semantics=("parallel", "parallel", "arbitrary"),
            vmem_limit_bytes=vmem_limit,
        ),
        cost_estimate=pl.CostEstimate(
            flops=2 * m * n * k,
            transcendentals=0,
            bytes_accessed=int(bytes_accessed),
        ),
    )(*args)


# ---------------------------------------------------------------------------
# GCN forward
# ---------------------------------------------------------------------------

def prepare_gcn_graph(adj, params, *, compute_dtype=jnp.bfloat16):
    """Pad + cast the per-graph constants ONCE (hoisted off the forward path).

    Returns (adj_p, ((w1_p, b1_p), (w2_p, b2_p))).  adj_p is padded to a
    multiple of 128 and cast to compute_dtype.  Padded adj *columns* are zero,
    which is the invariant that keeps padded hidden rows (= relu(b) != 0) from
    contaminating real output rows.
    """
    n = adj.shape[0]
    n_p = _round_up(n, _LANE)
    adj_p = jnp.pad(adj, ((0, n_p - n), (0, n_p - n))).astype(compute_dtype)

    layers = []
    for w, b in params:
        fi, fo = w.shape
        fi_p, fo_p = _round_up(fi, _LANE), _round_up(fo, _LANE)
        w_p = jnp.pad(w, ((0, fi_p - fi), (0, fo_p - fo))).astype(compute_dtype)
        b_p = jnp.pad(b, (0, fo_p - fo)).reshape(1, fo_p).astype(jnp.float32)
        layers.append((w_p, b_p))
    return adj_p, tuple(layers)


def gcn_apply(x, adj_p, layers, *, nclass, compute_dtype=jnp.bfloat16):
    """relu(gc2(relu(gc1(x, adj)), adj)) on pre-padded graph constants."""
    n, f_in = x.shape
    n_p = adj_p.shape[0]
    f_in_p = layers[0][0].shape[0]
    assert n <= n_p and f_in <= f_in_p

    h = jnp.pad(x, ((0, n_p - n), (0, f_in_p - f_in)))
    for w_p, b_p in layers:
        # support = h @ W  — computed exactly once per layer.
        support = _tiled_matmul(h.astype(compute_dtype), w_p,
                                out_dtype=compute_dtype)
        # h = relu(adj @ support + b) — dominant HBM-bound matmul with
        # support VMEM-resident, bias + ReLU fused into the last k step, and
        # accumulation directly in the resident f32 output block.  Padded
        # rows of h become relu(b) != 0; harmless only because the padded adj
        # columns are zero (see prepare_gcn_graph).
        h = _tiled_matmul(adj_p, support, bias=b_p, out_dtype=jnp.float32)
    return h[:n, :nclass]


def gcn_forward(x, adj, params, *, compute_dtype=jnp.bfloat16):
    """One-off convenience wrapper (pads/casts adj on every call; prefer
    prepare_gcn_graph + gcn_apply when the graph is reused across forwards)."""
    nclass = params[-1][0].shape[1]
    adj_p, layers = prepare_gcn_graph(adj, params, compute_dtype=compute_dtype)
    return gcn_apply(x, adj_p, layers, nclass=nclass,
                     compute_dtype=compute_dtype)


def init_graph_conv_params(key, in_features, out_features):
    """GraphConvolution.reset_parameters: uniform(-stdv, stdv), stdv = 1/sqrt(F_out)."""
    stdv = 1.0 / math.sqrt(out_features)
    kw, kb = jax.random.split(key)
    w = jax.random.uniform(kw, (in_features, out_features), jnp.float32,
                           minval=-stdv, maxval=stdv)
    b = jax.random.uniform(kb, (out_features,), jnp.float32,
                           minval=-stdv, maxval=stdv)
    return w, b


if __name__ == "__main__":
    key = jax.random.PRNGKey(0)
    k_x, k_adj, k_p1, k_p2 = jax.random.split(key, 4)

    # Small synthetic graph: N nodes, nfeat -> nhid -> nclass
    N, nfeat, nhid, nclass = 8, 16, 32, 8

    x = jax.random.normal(k_x, (N, nfeat), jnp.float32)

    # Symmetric, row-normalized adjacency (deterministic)
    a = jax.random.uniform(k_adj, (N, N), jnp.float32)
    a = (a + a.T) * 0.5 + jnp.eye(N, dtype=jnp.float32)
    adj = a / jnp.sum(a, axis=1, keepdims=True)

    params = (
        init_graph_conv_params(k_p1, nfeat, nhid),
        init_graph_conv_params(k_p2, nhid, nclass),
    )

    # Reference in plain JAX (same semantics as the torch.mm chain + relu).
    (w1, b1), (w2, b2) = params
    ref = jnp.maximum(adj @ (x @ w1) + b1, 0.0)
    ref = jnp.maximum(adj @ (ref @ w2) + b2, 0.0)

    # --- bf16 default path: pad/cast hoisted, hot path is gcn_apply ---------
    adj_bf16, layers_bf16 = prepare_gcn_graph(adj, params,
                                              compute_dtype=jnp.bfloat16)
    fwd_bf16 = jax.jit(functools.partial(gcn_apply, nclass=nclass,
                                         compute_dtype=jnp.bfloat16))
    out_bf16 = jax.block_until_ready(fwd_bf16(x, adj_bf16, layers_bf16))
    assert out_bf16.shape == (N, nclass)
    assert jnp.allclose(out_bf16, ref, atol=5e-2, rtol=5e-2)

    # --- f32 compute path: tighter numerics check ---------------------------
    adj_f32, layers_f32 = prepare_gcn_graph(adj, params,
                                            compute_dtype=jnp.float32)
    fwd_f32 = jax.jit(functools.partial(gcn_apply, nclass=nclass,
                                        compute_dtype=jnp.float32))
    out_f32 = jax.block_until_ready(fwd_f32(x, adj_f32, layers_f32))
    assert out_f32.shape == (N, nclass)
    # Tolerance scales with contraction depth (TPU f32 matmul is multi-pass).
    k_pad = max(_round_up(N, _LANE), _round_up(nfeat, _LANE))
    assert jnp.allclose(out_f32, ref, atol=1e-6 * k_pad, rtol=1e-5)

    # Convenience wrapper (one-off use) still works.
    out_once = jax.block_until_ready(
        jax.jit(lambda x_, adj_, p_: gcn_forward(x_, adj_, p_))(x, adj, params))
    assert out_once.shape == (N, nclass)
    assert jnp.allclose(out_once, ref, atol=5e-2, rtol=5e-2)

    print("KERNEL_OK")
</pallas_src>

<mosaic_0001>
module attributes {stable_mosaic.version = 11 : i64} {
  func.func @kernel(%arg0: i32, %arg1: i32, %arg2: i32, %arg3: memref<128x128xbf16, #tpu.memory_space<vmem>>, %arg4: memref<128x128xbf16, #tpu.memory_space<vmem>>, %arg5: memref<1x128xf32, #tpu.memory_space<vmem>>, %arg6: memref<128x128xf32, #tpu.memory_space<vmem>>) attributes {dimension_semantics = [#tpu.dimension_semantics<parallel>, #tpu.dimension_semantics<parallel>, #tpu.dimension_semantics<arbitrary>], iteration_bounds = array<i64: 1, 1, 1>, scalar_prefetch = 0 : i64, scratch_operands = 0 : i64, tpu.core_type = #tpu.core_type<tc>, window_params = [{transform_indices = @transform_0, window_bounds = array<i64: 128, 128>}, {transform_indices = @transform_1, window_bounds = array<i64: 128, 128>}, {transform_indices = @transform_2, window_bounds = array<i64: 1, 128>}, {transform_indices = @transform_3, window_bounds = array<i64: 128, 128>}]} {
    %c0_i32 = arith.constant 0 : i32
    %0 = arith.cmpi eq, %arg2, %c0_i32 : i32
    %1 = arith.extui %0 : i1 to i32
    %c0_i32_0 = arith.constant 0 : i32
    %2 = arith.cmpi ne, %1, %c0_i32_0 : i32
    scf.if %2 {
      %cst_9 = arith.constant 0.000000e+00 : f32
      %15 = vector.broadcast %cst_9 : f32 to vector<128x128xf32>
      %c0_10 = arith.constant 0 : index
      %c0_11 = arith.constant 0 : index
      %16 = vector.load %arg6[%c0_10, %c0_11] : memref<128x128xf32, #tpu.memory_space<vmem>>, vector<128x128xf32>
      tpu.vector_store %arg6[%c0_10, %c0_11], %15 {strides = array<i32>} : memref<128x128xf32, #tpu.memory_space<vmem>>, vector<128x128xf32>,
    } else {
    }
    %c128_i32 = arith.constant 128 : i32
    %3 = arith.muli %arg2, %c128_i32 : i32
    %4 = tpu.assume_multiple %3, 128 : i32
    %5 = arith.index_cast %4 : i32 to index
    %c0 = arith.constant 0 : index
    %6 = vector.load %arg4[%5, %c0] : memref<128x128xbf16, #tpu.memory_space<vmem>>, vector<128x128xbf16>
    %c0_1 = arith.constant 0 : index
    %c0_2 = arith.constant 0 : index
    %7 = vector.load %arg6[%c0_1, %c0_2] : memref<128x128xf32, #tpu.memory_space<vmem>>, vector<128x128xf32>
    %c0_3 = arith.constant 0 : index
    %c0_4 = arith.constant 0 : index
    %8 = vector.load %arg3[%c0_3, %c0_4] : memref<128x128xbf16, #tpu.memory_space<vmem>>, vector<128x128xbf16>
    %cst = arith.constant dense<0.000000e+00> : vector<128x128xf32>
    %9 = tpu.matmul %8, %6, %cst {dimension_numbers = #tpu.dot_dimension_numbers<[1], [0], [0], [1], [0, 0, 1, 1], [], []>} : vector<128x128xbf16>, vector<128x128xbf16>, vector<128x128xf32> -> vector<128x128xf32>
    %10 = arith.addf %7, %9 : vector<128x128xf32>
    %c0_5 = arith.constant 0 : index
    %c0_6 = arith.constant 0 : index
    %11 = vector.load %arg6[%c0_5, %c0_6] : memref<128x128xf32, #tpu.memory_space<vmem>>, vector<128x128xf32>
    tpu.vector_store %arg6[%c0_5, %c0_6], %10 {strides = array<i32>} : memref<128x128xf32, #tpu.memory_space<vmem>>, vector<128x128xf32>,
    %c0_i32_7 = arith.constant 0 : i32
    %12 = arith.cmpi eq, %arg2, %c0_i32_7 : i32
    %13 = arith.extui %12 : i1 to i32
    %c0_i32_8 = arith.constant 0 : i32
    %14 = arith.cmpi ne, %13, %c0_i32_8 : i32
    scf.if %14 {
      %c0_9 = arith.constant 0 : index
      %c0_10 = arith.constant 0 : index
      %15 = vector.load %arg6[%c0_9, %c0_10] : memref<128x128xf32, #tpu.memory_space<vmem>>, vector<128x128xf32>
      %c0_11 = arith.constant 0 : index
      %c0_12 = arith.constant 0 : index
      %16 = vector.load %arg5[%c0_11, %c0_12] : memref<1x128xf32, #tpu.memory_space<vmem>>, vector<1x128xf32>
      %17 = vector.broadcast %16 : vector<1x128xf32> to vector<128x128xf32>
      %18 = arith.addf %15, %17 : vector<128x128xf32>
      %cst_13 = arith.constant 0.000000e+00 : f32
      %19 = vector.broadcast %cst_13 : f32 to vector<128x128xf32>
      %20 = arith.maximumf %18, %19 : vector<128x128xf32>
      %c0_14 = arith.constant 0 : index
      %c0_15 = arith.constant 0 : index
      %21 = vector.load %arg6[%c0_14, %c0_15] : memref<128x128xf32, #tpu.memory_space<vmem>>, vector<128x128xf32>
      tpu.vector_store %arg6[%c0_14, %c0_15], %20 {strides = array<i32>} : memref<128x128xf32, #tpu.memory_space<vmem>>, vector<128x128xf32>,
    } else {
    }
    return
  }
  func.func @transform_0(%arg0: i32, %arg1: i32, %arg2: i32) -> (i32, i32) {
    %c0_i32 = arith.constant 0 : i32
    return %arg0, %arg2 : i32, i32
  }
  func.func @transform_1(%arg0: i32, %arg1: i32, %arg2: i32) -> (i32, i32) {
    %c0_i32 = arith.constant 0 : i32
    %c0_i32_0 = arith.constant 0 : i32
    return %c0_i32, %arg1 : i32, i32
  }
  func.func @transform_2(%arg0: i32, %arg1: i32, %arg2: i32) -> (i32, i32) {
    %c0_i32 = arith.constant 0 : i32
    %c0_i32_0 = arith.constant 0 : i32
    return %c0_i32, %arg1 : i32, i32
  }
  func.func @transform_3(%arg0: i32, %arg1: i32, %arg2: i32) -> (i32, i32) {
    %c0_i32 = arith.constant 0 : i32
    return %arg0, %arg1 : i32, i32
  }
}

module attributes {stable_mosaic.version = 11 : i64} {
  func.func @kernel(%arg0: i32, %arg1: i32, %arg2: i32, %arg3: memref<128x128xbf16, #tpu.memory_space<vmem>>, %arg4: memref<128x128xbf16, #tpu.memory_space<vmem>>, %arg5: memref<128x128xbf16, #tpu.memory_space<vmem>>, %arg6: memref<128x128xf32, #tpu.memory_space<vmem>>) attributes {dimension_semantics = [#tpu.dimension_semantics<parallel>, #tpu.dimension_semantics<parallel>, #tpu.dimension_semantics<arbitrary>], iteration_bounds = array<i64: 1, 1, 1>, scalar_prefetch = 0 : i64, scratch_operands = 1 : i64, tpu.core_type = #tpu.core_type<tc>, window_params = [{transform_indices = @transform_0, window_bounds = array<i64: 128, 128>}, {transform_indices = @transform_1, window_bounds = array<i64: 128, 128>}, {transform_indices = @transform_2, window_bounds = array<i64: 128, 128>}]} {
    %c0_i32 = arith.constant 0 : i32
    %0 = arith.cmpi eq, %arg2, %c0_i32 : i32
    %1 = arith.extui %0 : i1 to i32
    %c0_i32_0 = arith.constant 0 : i32
    %2 = arith.cmpi ne, %1, %c0_i32_0 : i32
    scf.if %2 {
      %cst_9 = arith.constant 0.000000e+00 : f32
      %15 = vector.broadcast %cst_9 : f32 to vector<128x128xf32>
      %c0_10 = arith.constant 0 : index
      %c0_11 = arith.constant 0 : index
      %16 = vector.load %arg6[%c0_10, %c0_11] : memref<128x128xf32, #tpu.memory_space<vmem>>, vector<128x128xf32>
      tpu.vector_store %arg6[%c0_10, %c0_11], %15 {strides = array<i32>} : memref<128x128xf32, #tpu.memory_space<vmem>>, vector<128x128xf32>,
    } else {
    }
    %c128_i32 = arith.constant 128 : i32
    %3 = arith.muli %arg2, %c128_i32 : i32
    %4 = tpu.assume_multiple %3, 128 : i32
    %5 = arith.index_cast %4 : i32 to index
    %c0 = arith.constant 0 : index
    %6 = vector.load %arg4[%5, %c0] : memref<128x128xbf16, #tpu.memory_space<vmem>>, vector<128x128xbf16>
    %c0_1 = arith.constant 0 : index
    %c0_2 = arith.constant 0 : index
    %7 = vector.load %arg6[%c0_1, %c0_2] : memref<128x128xf32, #tpu.memory_space<vmem>>, vector<128x128xf32>
    %c0_3 = arith.constant 0 : index
    %c0_4 = arith.constant 0 : index
    %8 = vector.load %arg3[%c0_3, %c0_4] : memref<128x128xbf16, #tpu.memory_space<vmem>>, vector<128x128xbf16>
    %cst = arith.constant dense<0.000000e+00> : vector<128x128xf32>
    %9 = tpu.matmul %8, %6, %cst {dimension_numbers = #tpu.dot_dimension_numbers<[1], [0], [0], [1], [0, 0, 1, 1], [], []>} : vector<128x128xbf16>, vector<128x128xbf16>, vector<128x128xf32> -> vector<128x128xf32>
    %10 = arith.addf %7, %9 : vector<128x128xf32>
    %c0_5 = arith.constant 0 : index
    %c0_6 = arith.constant 0 : index
    %11 = vector.load %arg6[%c0_5, %c0_6] : memref<128x128xf32, #tpu.memory_space<vmem>>, vector<128x128xf32>
    tpu.vector_store %arg6[%c0_5, %c0_6], %10 {strides = array<i32>} : memref<128x128xf32, #tpu.memory_space<vmem>>, vector<128x128xf32>,
    %c0_i32_7 = arith.constant 0 : i32
    %12 = arith.cmpi eq, %arg2, %c0_i32_7 : i32
    %13 = arith.extui %12 : i1 to i32
    %c0_i32_8 = arith.constant 0 : i32
    %14 = arith.cmpi ne, %13, %c0_i32_8 : i32
    scf.if %14 {
      %c0_9 = arith.constant 0 : index
      %c0_10 = arith.constant 0 : index
      %15 = vector.load %arg6[%c0_9, %c0_10] : memref<128x128xf32, #tpu.memory_space<vmem>>, vector<128x128xf32>
      %16 = arith.truncf %15 : vector<128x128xf32> to vector<128x128xbf16>
      %c0_11 = arith.constant 0 : index
      %c0_12 = arith.constant 0 : index
      %17 = vector.load %arg5[%c0_11, %c0_12] : memref<128x128xbf16, #tpu.memory_space<vmem>>, vector<128x128xbf16>
      tpu.vector_store %arg5[%c0_11, %c0_12], %16 {strides = array<i32>} : memref<128x128xbf16, #tpu.memory_space<vmem>>, vector<128x128xbf16>,
    } else {
    }
    return
  }
  func.func @transform_0(%arg0: i32, %arg1: i32, %arg2: i32) -> (i32, i32) {
    %c0_i32 = arith.constant 0 : i32
    return %arg0, %arg2 : i32, i32
  }
  func.func @transform_1(%arg0: i32, %arg1: i32, %arg2: i32) -> (i32, i32) {
    %c0_i32 = arith.constant 0 : i32
    %c0_i32_0 = arith.constant 0 : i32
    return %c0_i32, %arg1 : i32, i32
  }
  func.func @transform_2(%arg0: i32, %arg1: i32, %arg2: i32) -> (i32, i32) {
    %c0_i32 = arith.constant 0 : i32
    return %arg0, %arg1 : i32, i32
  }
}

</mosaic_0001>

<llo_original>
// kernel: gcn_apply.5
$region0: #{gcn_apply.5}
  #allocation0 [shape = 'u32[]', space=smem, size = 0x4, offset = 0x4, fixed_abs, tag = 'smem constant byte address 0x4 - core index']
  #allocation1 [shape = 'u32[72,128]{1,0:T(1,128)}', space=vmem, size = 0x9000, scoped, tag = 'internal scratch']
  %s0 = inlined_call_operand.vmem [shape: bf16[128,128], index: 0, kind: input, shape index: {}]
  %s1 = inlined_call_operand.vmem [shape: bf16[128,128], index: 1, kind: input, shape index: {}]
  %s2 = inlined_call_operand.vmem [shape: f32[1,128], index: 2, kind: input, shape index: {}]
  %s3 = inlined_call_operand.vmem [shape: f32[128,128], index: 3, kind: output, shape index: {}]
  %s4 = sld [smem:[#allocation0]]
  $region30: #{gcn_apply.5} parent=0
    _
  %s6 = ssub.s32 1, %s4
  %s7 = scalar_select 0, %s6, %s4
  // Predicated region
  $region2: #{gcn_apply.5} parent=0 // pred_check
    _
  $region3: #{gcn_apply.5} parent=0 // pred_check_branch
    %9 = sbr.rel (0) target = $region5
  $region4: #{gcn_apply.5} parent=0 // pred_region
    _
  $region5: #{gcn_apply.5} parent=0 // pred_fallthru
    _
  // Predicated region
  $region6: #{gcn_apply.5} parent=0 // pred_check
    _
  $region7: #{gcn_apply.5} parent=0 // pred_check_branch
    %11 = sbr.rel (0) target = $region9
  $region8: #{gcn_apply.5} parent=0 // pred_region
    _
  $region9: #{gcn_apply.5} parent=0 // pred_fallthru
    _
  // Predicated region
  $region10: #{gcn_apply.5} parent=0 // pred_check
    _
  $region11: #{gcn_apply.5} parent=0 // pred_check_branch
    %13 = sbr.rel (0) target = $region13
  $region12: #{gcn_apply.5} parent=0 // pred_region
    _
  $region13: #{gcn_apply.5} parent=0 // pred_fallthru
    _
  %p14 = scmp.eq.s32.totalorder 0, 0
  // Predicated region
  $region14: #{gcn_apply.5} parent=0 // pred_check
    %p15 = pneg %p14
  $region15: #{gcn_apply.5} parent=0 // pred_check_branch
    %17 = sbr.rel (%p15) target = $region17
  $region16: #{gcn_apply.5} parent=0 // pred_region
    %18 = vst [vmem:[%s3] sm:$0xff] 0.0
    %19 = vst [vmem:[%s3 + $0x8] sm:$0xff] 0.0
    %20 = vst [vmem:[%s3 + $0x10] sm:$0xff] 0.0
    %21 = vst [vmem:[%s3 + $0x18] sm:$0xff] 0.0
    %22 = vst [vmem:[%s3 + $0x20] sm:$0xff] 0.0
    %23 = vst [vmem:[%s3 + $0x28] sm:$0xff] 0.0
    %24 = vst [vmem:[%s3 + $0x30] sm:$0xff] 0.0
    %25 = vst [vmem:[%s3 + $0x38] sm:$0xff] 0.0
    %26 = vst [vmem:[%s3 + $0x40] sm:$0xff] 0.0
    %27 = vst [vmem:[%s3 + $0x48] sm:$0xff] 0.0
    %28 = vst [vmem:[%s3 + $0x50] sm:$0xff] 0.0
    %29 = vst [vmem:[%s3 + $0x58] sm:$0xff] 0.0
    %30 = vst [vmem:[%s3 + $0x60] sm:$0xff] 0.0
    %31 = vst [vmem:[%s3 + $0x68] sm:$0xff] 0.0
    %32 = vst [vmem:[%s3 + $0x70] sm:$0xff] 0.0
    %33 = vst [vmem:[%s3 + $0x78] sm:$0xff] 0.0
  $region17: #{gcn_apply.5} parent=0 // pred_fallthru
    _
  %s34 = smul.u32 0, 128
  %s35 = sshra.s32 %s34, 3
  %s36 = sand.u32 %s34, 7
  %s37 = smul.addr %s35, 4
  %s38 = scalar_lea.vmem %s1, %s37
  %v39 = vld [vmem:[%s38] sm:$0xf]
  %v40 = vld [vmem:[%s38 + $0x4] sm:$0xf]
  %v41 = vld [vmem:[%s38 + $0x8] sm:$0xf]
  %v42 = vld [vmem:[%s38 + $0xc] sm:$0xf]
  %v43 = vld [vmem:[%s38 + $0x10] sm:$0xf]
  %v44 = vld [vmem:[%s38 + $0x14] sm:$0xf]
  %v45 = vld [vmem:[%s38 + $0x18] sm:$0xf]
  %v46 = vld [vmem:[%s38 + $0x1c] sm:$0xf]
  %v47 = vld [vmem:[%s38 + $0x20] sm:$0xf]
  %v48 = vld [vmem:[%s38 + $0x24] sm:$0xf]
  %v49 = vld [vmem:[%s38 + $0x28] sm:$0xf]
  %v50 = vld [vmem:[%s38 + $0x2c] sm:$0xf]
  %v51 = vld [vmem:[%s38 + $0x30] sm:$0xf]
  %v52 = vld [vmem:[%s38 + $0x34] sm:$0xf]
  %v53 = vld [vmem:[%s38 + $0x38] sm:$0xf]
  %v54 = vld [vmem:[%s38 + $0x3c] sm:$0xf]
  %v55 = vld [vmem:[%s3] sm:$0xff]
  %v56 = vld [vmem:[%s3 + $0x8] sm:$0xff]
  %v57 = vld [vmem:[%s3 + $0x10] sm:$0xff]
  %v58 = vld [vmem:[%s3 + $0x18] sm:$0xff]
  %v59 = vld [vmem:[%s3 + $0x20] sm:$0xff]
  %v60 = vld [vmem:[%s3 + $0x28] sm:$0xff]
  %v61 = vld [vmem:[%s3 + $0x30] sm:$0xff]
  %v62 = vld [vmem:[%s3 + $0x38] sm:$0xff]
  %v63 = vld [vmem:[%s3 + $0x40] sm:$0xff]
  %v64 = vld [vmem:[%s3 + $0x48] sm:$0xff]
  %v65 = vld [vmem:[%s3 + $0x50] sm:$0xff]
  %v66 = vld [vmem:[%s3 + $0x58] sm:$0xff]
  %v67 = vld [vmem:[%s3 + $0x60] sm:$0xff]
  %v68 = vld [vmem:[%s3 + $0x68] sm:$0xff]
  %v69 = vld [vmem:[%s3 + $0x70] sm:$0xff]
  %v70 = vld [vmem:[%s3 + $0x78] sm:$0xff]
  %v71 = vld [vmem:[%s0] sm:$0xf]
  %v72 = vld [vmem:[%s0 + $0x4] sm:$0xf]
  %v73 = vld [vmem:[%s0 + $0x8] sm:$0xf]
  %v74 = vld [vmem:[%s0 + $0xc] sm:$0xf]
  %v75 = vld [vmem:[%s0 + $0x10] sm:$0xf]
  %v76 = vld [vmem:[%s0 + $0x14] sm:$0xf]
  %v77 = vld [vmem:[%s0 + $0x18] sm:$0xf]
  %v78 = vld [vmem:[%s0 + $0x1c] sm:$0xf]
  %v79 = vld [vmem:[%s0 + $0x20] sm:$0xf]
  %v80 = vld [vmem:[%s0 + $0x24] sm:$0xf]
  %v81 = vld [vmem:[%s0 + $0x28] sm:$0xf]
  %v82 = vld [vmem:[%s0 + $0x2c] sm:$0xf]
  %v83 = vld [vmem:[%s0 + $0x30] sm:$0xf]
  %v84 = vld [vmem:[%s0 + $0x34] sm:$0xf]
  %v85 = vld [vmem:[%s0 + $0x38] sm:$0xf]
  %v86 = vld [vmem:[%s0 + $0x3c] sm:$0xf]
  %v103 = vunpack.c.l.b16 %v71
  %v104 = vunpack.c.l.b16 %v72
  %v105 = vunpack.c.l.b16 %v73
  %v106 = vunpack.c.l.b16 %v74
  %v107 = vunpack.c.l.b16 %v75
  %v108 = vunpack.c.l.b16 %v76
  %v109 = vunpack.c.l.b16 %v77
  %v110 = vunpack.c.l.b16 %v78
  %v111 = vunpack.c.l.b16 %v79
  %v112 = vunpack.c.l.b16 %v80
  %v113 = vunpack.c.l.b16 %v81
  %v114 = vunpack.c.l.b16 %v82
  %v115 = vunpack.c.l.b16 %v83
  %v116 = vunpack.c.l.b16 %v84
  %v117 = vunpack.c.l.b16 %v85
  %v118 = vunpack.c.l.b16 %v86
  %v119 = vpack.c.b16 %v104, %v103
  %v120 = vpack.c.b16 %v106, %v105
  %v121 = vpack.c.b16 %v108, %v107
  %v122 = vpack.c.b16 %v110, %v109
  %v123 = vpack.c.b16 %v112, %v111
  %v124 = vpack.c.b16 %v114, %v113
  %v125 = vpack.c.b16 %v116, %v115
  %v126 = vpack.c.b16 %v118, %v117
  %v151 = vunpack.c.l.b16 %v39
  %v152 = vunpack.c.l.b16 %v40
  %v153 = vunpack.c.l.b16 %v41
  %v154 = vunpack.c.l.b16 %v42
  %v155 = vunpack.c.l.b16 %v43
  %v156 = vunpack.c.l.b16 %v44
  %v157 = vunpack.c.l.b16 %v45
  %v158 = vunpack.c.l.b16 %v46
  %v159 = vunpack.c.l.b16 %v47
  %v160 = vunpack.c.l.b16 %v48
  %v161 = vunpack.c.l.b16 %v49
  %v162 = vunpack.c.l.b16 %v50
  %v163 = vunpack.c.l.b16 %v51
  %v164 = vunpack.c.l.b16 %v52
  %v165 = vunpack.c.l.b16 %v53
  %v166 = vunpack.c.l.b16 %v54
  %v167 = vpack.c.b16 %v152, %v151
  %v168 = vpack.c.b16 %v154, %v153
  %v169 = vpack.c.b16 %v156, %v155
  %v170 = vpack.c.b16 %v158, %v157
  %v171 = vpack.c.b16 %v160, %v159
  %v172 = vpack.c.b16 %v162, %v161
  %v173 = vpack.c.b16 %v164, %v163
  %v174 = vpack.c.b16 %v166, %v165
  %183 = vmatpush.bf16.msra.mxu0 %v174
  %184 = vmatpush.bf16.msra.mxu0 %v173
  %185 = vmatpush.bf16.msra.mxu0 %v172
  %186 = vmatpush.bf16.msra.mxu0 %v171
  %187 = vmatpush.bf16.msra.mxu0 %v170
  %188 = vmatpush.bf16.msra.mxu0 %v169
  %189 = vmatpush.bf16.msra.mxu0 %v168
  %190 = vmatpush.bf16.msra.mxu0 %v167
  %191 = vmatmul.bf16.gmra.mxu0 %v119
  %v192 = vpop.f32.mrf.mxu0
  %v193 = vadd.f32 0.0, %v192
  %v194 = vpop.f32.mrf.mxu0
  %v195 = vadd.f32 0.0, %v194
  %196 = vmatmul.bf16.gmra.mxu0 %v120
  %v197 = vpop.f32.mrf.mxu0
  %v198 = vadd.f32 0.0, %v197
  %v199 = vpop.f32.mrf.mxu0
  %v200 = vadd.f32 0.0, %v199
  %201 = vmatmul.bf16.gmra.mxu0 %v121
  %v202 = vpop.f32.mrf.mxu0
  %v203 = vadd.f32 0.0, %v202
  %v204 = vpop.f32.mrf.mxu0
  %v205 = vadd.f32 0.0, %v204
  %206 = vmatmul.bf16.gmra.mxu0 %v122
  %v207 = vpop.f32.mrf.mxu0
  %v208 = vadd.f32 0.0, %v207
  %v209 = vpop.f32.mrf.mxu0
  %v210 = vadd.f32 0.0, %v209
  %211 = vmatmul.bf16.gmra.mxu0 %v123
  %v212 = vpop.f32.mrf.mxu0
  %v213 = vadd.f32 0.0, %v212
  %v214 = vpop.f32.mrf.mxu0
  %v215 = vadd.f32 0.0, %v214
  %216 = vmatmul.bf16.gmra.mxu0 %v124
  %v217 = vpop.f32.mrf.mxu0
  %v218 = vadd.f32 0.0, %v217
  %v219 = vpop.f32.mrf.mxu0
  %v220 = vadd.f32 0.0, %v219
  %221 = vmatmul.bf16.gmra.mxu0 %v125
  %v222 = vpop.f32.mrf.mxu0
  %v223 = vadd.f32 0.0, %v222
  %v224 = vpop.f32.mrf.mxu0
  %v225 = vadd.f32 0.0, %v224
  %226 = vmatmul.bf16.gmra.mxu0 %v126
  %v227 = vpop.f32.mrf.mxu0
  %v228 = vadd.f32 0.0, %v227
  %v229 = vpop.f32.mrf.mxu0
  %v230 = vadd.f32 0.0, %v229
  %231 = vdwg.mxu0
  %v232 = vadd.f32 %v55, %v193
  %v233 = vadd.f32 %v56, %v195
  %v234 = vadd.f32 %v57, %v198
  %v235 = vadd.f32 %v58, %v200
  %v236 = vadd.f32 %v59, %v203
  %v237 = vadd.f32 %v60, %v205
  %v238 = vadd.f32 %v61, %v208
  %v239 = vadd.f32 %v62, %v210
  %v240 = vadd.f32 %v63, %v213
  %v241 = vadd.f32 %v64, %v215
  %v242 = vadd.f32 %v65, %v218
  %v243 = vadd.f32 %v66, %v220
  %v244 = vadd.f32 %v67, %v223
  %v245 = vadd.f32 %v68, %v225
  %v246 = vadd.f32 %v69, %v228
  %v247 = vadd.f32 %v70, %v230
  %248 = vst [vmem:[%s3] sm:$0xff] %v232
  %249 = vst [vmem:[%s3 + $0x8] sm:$0xff] %v233
  %250 = vst [vmem:[%s3 + $0x10] sm:$0xff] %v234
  %251 = vst [vmem:[%s3 + $0x18] sm:$0xff] %v235
  %252 = vst [vmem:[%s3 + $0x20] sm:$0xff] %v236
  %253 = vst [vmem:[%s3 + $0x28] sm:$0xff] %v237
  %254 = vst [vmem:[%s3 + $0x30] sm:$0xff] %v238
  %255 = vst [vmem:[%s3 + $0x38] sm:$0xff] %v239
  %256 = vst [vmem:[%s3 + $0x40] sm:$0xff] %v240
  %257 = vst [vmem:[%s3 + $0x48] sm:$0xff] %v241
  %258 = vst [vmem:[%s3 + $0x50] sm:$0xff] %v242
  %259 = vst [vmem:[%s3 + $0x58] sm:$0xff] %v243
  %260 = vst [vmem:[%s3 + $0x60] sm:$0xff] %v244
  %261 = vst [vmem:[%s3 + $0x68] sm:$0xff] %v245
  %262 = vst [vmem:[%s3 + $0x70] sm:$0xff] %v246
  %263 = vst [vmem:[%s3 + $0x78] sm:$0xff] %v247
  // Predicated region
  $region18: #{gcn_apply.5} parent=0 // pred_check
    %p264 = pneg %p14
  $region19: #{gcn_apply.5} parent=0 // pred_check_branch
    %266 = sbr.rel (%p264) target = $region21
  $region20: #{gcn_apply.5} parent=0 // pred_region
    %v267 = vld [vmem:[%s3] sm:$0xff]
    %v268 = vld [vmem:[%s3 + $0x8] sm:$0xff]
    %v269 = vld [vmem:[%s3 + $0x10] sm:$0xff]
    %v270 = vld [vmem:[%s3 + $0x18] sm:$0xff]
    %v271 = vld [vmem:[%s3 + $0x20] sm:$0xff]
    %v272 = vld [vmem:[%s3 + $0x28] sm:$0xff]
    %v273 = vld [vmem:[%s3 + $0x30] sm:$0xff]
    %v274 = vld [vmem:[%s3 + $0x38] sm:$0xff]
    %v275 = vld [vmem:[%s3 + $0x40] sm:$0xff]
    %v276 = vld [vmem:[%s3 + $0x48] sm:$0xff]
    %v277 = vld [vmem:[%s3 + $0x50] sm:$0xff]
    %v278 = vld [vmem:[%s3 + $0x58] sm:$0xff]
    %v279 = vld [vmem:[%s3 + $0x60] sm:$0xff]
    %v280 = vld [vmem:[%s3 + $0x68] sm:$0xff]
    %v281 = vld [vmem:[%s3 + $0x70] sm:$0xff]
    %v282 = vld [vmem:[%s3 + $0x78] sm:$0xff]
    %v283 = vld [vmem:[%s2] sm:$0x1]
    %v285 = vperm.slane %v283, 0
    %v287 = vadd.f32 %v267, %v285
    %v288 = vadd.f32 %v268, %v285
    %v289 = vadd.f32 %v269, %v285
    %v290 = vadd.f32 %v270, %v285
    %v291 = vadd.f32 %v271, %v285
    %v292 = vadd.f32 %v272, %v285
    %v293 = vadd.f32 %v273, %v285
    %v294 = vadd.f32 %v274, %v285
    %v295 = vadd.f32 %v275, %v285
    %v296 = vadd.f32 %v276, %v285
    %v297 = vadd.f32 %v277, %v285
    %v298 = vadd.f32 %v278, %v285
    %v299 = vadd.f32 %v279, %v285
    %v300 = vadd.f32 %v280, %v285
    %v301 = vadd.f32 %v281, %v285
    %v302 = vadd.f32 %v282, %v285
    %v303 = vmax.f32 %v287, 0.0
    %v304 = vmax.f32 %v288, 0.0
    %v305 = vmax.f32 %v289, 0.0
    %v306 = vmax.f32 %v290, 0.0
    %v307 = vmax.f32 %v291, 0.0
    %v308 = vmax.f32 %v292, 0.0
    %v309 = vmax.f32 %v293, 0.0
    %v310 = vmax.f32 %v294, 0.0
    %v311 = vmax.f32 %v295, 0.0
    %v312 = vmax.f32 %v296, 0.0
    %v313 = vmax.f32 %v297, 0.0
    %v314 = vmax.f32 %v298, 0.0
    %v315 = vmax.f32 %v299, 0.0
    %v316 = vmax.f32 %v300, 0.0
    %v317 = vmax.f32 %v301, 0.0
    %v318 = vmax.f32 %v302, 0.0
    %319 = vst [vmem:[%s3] sm:$0xff] %v303
    %320 = vst [vmem:[%s3 + $0x8] sm:$0xff] %v304
    %321 = vst [vmem:[%s3 + $0x10] sm:$0xff] %v305
    %322 = vst [vmem:[%s3 + $0x18] sm:$0xff] %v306
    %323 = vst [vmem:[%s3 + $0x20] sm:$0xff] %v307
    %324 = vst [vmem:[%s3 + $0x28] sm:$0xff] %v308
    %325 = vst [vmem:[%s3 + $0x30] sm:$0xff] %v309
    %326 = vst [vmem:[%s3 + $0x38] sm:$0xff] %v310
    %327 = vst [vmem:[%s3 + $0x40] sm:$0xff] %v311
    %328 = vst [vmem:[%s3 + $0x48] sm:$0xff] %v312
    %329 = vst [vmem:[%s3 + $0x50] sm:$0xff] %v313
    %330 = vst [vmem:[%s3 + $0x58] sm:$0xff] %v314
    %331 = vst [vmem:[%s3 + $0x60] sm:$0xff] %v315
    %332 = vst [vmem:[%s3 + $0x68] sm:$0xff] %v316
    %333 = vst [vmem:[%s3 + $0x70] sm:$0xff] %v317
    %334 = vst [vmem:[%s3 + $0x78] sm:$0xff] %v318
  $region21: #{gcn_apply.5} parent=0 // pred_fallthru
    _
  // Predicated region
  $region22: #{gcn_apply.5} parent=0 // pred_check
    _
  $region23: #{gcn_apply.5} parent=0 // pred_check_branch
    %336 = sbr.rel (0) target = $region25
  $region24: #{gcn_apply.5} parent=0 // pred_region
    _
  $region25: #{gcn_apply.5} parent=0 // pred_fallthru
    _
  // Predicated region
  $region26: #{gcn_apply.5} parent=0 // pred_check
    _
  $region27: #{gcn_apply.5} parent=0 // pred_check_branch
    %338 = sbr.rel (0) target = $region29
  $region28: #{gcn_apply.5} parent=0 // pred_region
    _
  $region29: #{gcn_apply.5} parent=0 // pred_fallthru
    _

// kernel: gcn_apply.4
$region0: #{gcn_apply.4}
  #allocation0 [shape = 'u32[]', space=smem, size = 0x4, offset = 0x4, fixed_abs, tag = 'smem constant byte address 0x4 - core index']
  #allocation1 [shape = 'u32[72,128]{1,0:T(1,128)}', space=vmem, size = 0x9000, scoped, tag = 'internal scratch']
  #allocation2 [shape = 'f32[128,128]{1,0:T(8,128)}', space=vmem, size = 0x10000, scoped, tag = 'scratch operand']
  %s0 = inlined_call_operand.vmem [shape: bf16[128,128], index: 0, kind: input, shape index: {}]
  %s1 = inlined_call_operand.vmem [shape: bf16[128,128], index: 1, kind: input, shape index: {}]
  %s2 = inlined_call_operand.vmem [shape: bf16[128,128], index: 2, kind: output, shape index: {}]
  %s3 = sld [smem:[#allocation0]]
  $region26: #{gcn_apply.4} parent=0
    _
  %s5 = ssub.s32 1, %s3
  %s6 = scalar_select 0, %s5, %s3
  // Predicated region
  $region2: #{gcn_apply.4} parent=0 // pred_check
    _
  $region3: #{gcn_apply.4} parent=0 // pred_check_branch
    %8 = sbr.rel (0) target = $region5
  $region4: #{gcn_apply.4} parent=0 // pred_region
    _
  $region5: #{gcn_apply.4} parent=0 // pred_fallthru
    _
  // Predicated region
  $region6: #{gcn_apply.4} parent=0 // pred_check
    _
  $region7: #{gcn_apply.4} parent=0 // pred_check_branch
    %10 = sbr.rel (0) target = $region9
  $region8: #{gcn_apply.4} parent=0 // pred_region
    _
  $region9: #{gcn_apply.4} parent=0 // pred_fallthru
    _
  %p11 = scmp.eq.s32.totalorder 0, 0
  // Predicated region
  $region10: #{gcn_apply.4} parent=0 // pred_check
    %p12 = pneg %p11
  $region11: #{gcn_apply.4} parent=0 // pred_check_branch
    %14 = sbr.rel (%p12) target = $region13
  $region12: #{gcn_apply.4} parent=0 // pred_region
    %15 = vst [vmem:[#allocation2] sm:$0xff] 0.0
    %16 = vst [vmem:[#allocation2 + $0x8] sm:$0xff] 0.0
    %17 = vst [vmem:[#allocation2 + $0x10] sm:$0xff] 0.0
    %18 = vst [vmem:[#allocation2 + $0x18] sm:$0xff] 0.0
    %19 = vst [vmem:[#allocation2 + $0x20] sm:$0xff] 0.0
    %20 = vst [vmem:[#allocation2 + $0x28] sm:$0xff] 0.0
    %21 = vst [vmem:[#allocation2 + $0x30] sm:$0xff] 0.0
    %22 = vst [vmem:[#allocation2 + $0x38] sm:$0xff] 0.0
    %23 = vst [vmem:[#allocation2 + $0x40] sm:$0xff] 0.0
    %24 = vst [vmem:[#allocation2 + $0x48] sm:$0xff] 0.0
    %25 = vst [vmem:[#allocation2 + $0x50] sm:$0xff] 0.0
    %26 = vst [vmem:[#allocation2 + $0x58] sm:$0xff] 0.0
    %27 = vst [vmem:[#allocation2 + $0x60] sm:$0xff] 0.0
    %28 = vst [vmem:[#allocation2 + $0x68] sm:$0xff] 0.0
    %29 = vst [vmem:[#allocation2 + $0x70] sm:$0xff] 0.0
    %30 = vst [vmem:[#allocation2 + $0x78] sm:$0xff] 0.0
  $region13: #{gcn_apply.4} parent=0 // pred_fallthru
    _
  %s31 = smul.u32 0, 128
  %s32 = sshra.s32 %s31, 3
  %s33 = sand.u32 %s31, 7
  %s34 = smul.addr %s32, 4
  %s35 = scalar_lea.vmem %s1, %s34
  %v36 = vld [vmem:[%s35] sm:$0xf]
  %v37 = vld [vmem:[%s35 + $0x4] sm:$0xf]
  %v38 = vld [vmem:[%s35 + $0x8] sm:$0xf]
  %v39 = vld [vmem:[%s35 + $0xc] sm:$0xf]
  %v40 = vld [vmem:[%s35 + $0x10] sm:$0xf]
  %v41 = vld [vmem:[%s35 + $0x14] sm:$0xf]
  %v42 = vld [vmem:[%s35 + $0x18] sm:$0xf]
  %v43 = vld [vmem:[%s35 + $0x1c] sm:$0xf]
  %v44 = vld [vmem:[%s35 + $0x20] sm:$0xf]
  %v45 = vld [vmem:[%s35 + $0x24] sm:$0xf]
  %v46 = vld [vmem:[%s35 + $0x28] sm:$0xf]
  %v47 = vld [vmem:[%s35 + $0x2c] sm:$0xf]
  %v48 = vld [vmem:[%s35 + $0x30] sm:$0xf]
  %v49 = vld [vmem:[%s35 + $0x34] sm:$0xf]
  %v50 = vld [vmem:[%s35 + $0x38] sm:$0xf]
  %v51 = vld [vmem:[%s35 + $0x3c] sm:$0xf]
  %v52 = vld [vmem:[#allocation2] sm:$0xff]
  %v53 = vld [vmem:[#allocation2 + $0x8] sm:$0xff]
  %v54 = vld [vmem:[#allocation2 + $0x10] sm:$0xff]
  %v55 = vld [vmem:[#allocation2 + $0x18] sm:$0xff]
  %v56 = vld [vmem:[#allocation2 + $0x20] sm:$0xff]
  %v57 = vld [vmem:[#allocation2 + $0x28] sm:$0xff]
  %v58 = vld [vmem:[#allocation2 + $0x30] sm:$0xff]
  %v59 = vld [vmem:[#allocation2 + $0x38] sm:$0xff]
  %v60 = vld [vmem:[#allocation2 + $0x40] sm:$0xff]
  %v61 = vld [vmem:[#allocation2 + $0x48] sm:$0xff]
  %v62 = vld [vmem:[#allocation2 + $0x50] sm:$0xff]
  %v63 = vld [vmem:[#allocation2 + $0x58] sm:$0xff]
  %v64 = vld [vmem:[#allocation2 + $0x60] sm:$0xff]
  %v65 = vld [vmem:[#allocation2 + $0x68] sm:$0xff]
  %v66 = vld [vmem:[#allocation2 + $0x70] sm:$0xff]
  %v67 = vld [vmem:[#allocation2 + $0x78] sm:$0xff]
  %v68 = vld [vmem:[%s0] sm:$0xf]
  %v69 = vld [vmem:[%s0 + $0x4] sm:$0xf]
  %v70 = vld [vmem:[%s0 + $0x8] sm:$0xf]
  %v71 = vld [vmem:[%s0 + $0xc] sm:$0xf]
  %v72 = vld [vmem:[%s0 + $0x10] sm:$0xf]
  %v73 = vld [vmem:[%s0 + $0x14] sm:$0xf]
  %v74 = vld [vmem:[%s0 + $0x18] sm:$0xf]
  %v75 = vld [vmem:[%s0 + $0x1c] sm:$0xf]
  %v76 = vld [vmem:[%s0 + $0x20] sm:$0xf]
  %v77 = vld [vmem:[%s0 + $0x24] sm:$0xf]
  %v78 = vld [vmem:[%s0 + $0x28] sm:$0xf]
  %v79 = vld [vmem:[%s0 + $0x2c] sm:$0xf]
  %v80 = vld [vmem:[%s0 + $0x30] sm:$0xf]
  %v81 = vld [vmem:[%s0 + $0x34] sm:$0xf]
  %v82 = vld [vmem:[%s0 + $0x38] sm:$0xf]
  %v83 = vld [vmem:[%s0 + $0x3c] sm:$0xf]
  %v100 = vunpack.c.l.b16 %v68
  %v101 = vunpack.c.l.b16 %v69
  %v102 = vunpack.c.l.b16 %v70
  %v103 = vunpack.c.l.b16 %v71
  %v104 = vunpack.c.l.b16 %v72
  %v105 = vunpack.c.l.b16 %v73
  %v106 = vunpack.c.l.b16 %v74
  %v107 = vunpack.c.l.b16 %v75
  %v108 = vunpack.c.l.b16 %v76
  %v109 = vunpack.c.l.b16 %v77
  %v110 = vunpack.c.l.b16 %v78
  %v111 = vunpack.c.l.b16 %v79
  %v112 = vunpack.c.l.b16 %v80
  %v113 = vunpack.c.l.b16 %v81
  %v114 = vunpack.c.l.b16 %v82
  %v115 = vunpack.c.l.b16 %v83
  %v116 = vpack.c.b16 %v101, %v100
  %v117 = vpack.c.b16 %v103, %v102
  %v118 = vpack.c.b16 %v105, %v104
  %v119 = vpack.c.b16 %v107, %v106
  %v120 = vpack.c.b16 %v109, %v108
  %v121 = vpack.c.b16 %v111, %v110
  %v122 = vpack.c.b16 %v113, %v112
  %v123 = vpack.c.b16 %v115, %v114
  %v148 = vunpack.c.l.b16 %v36
  %v149 = vunpack.c.l.b16 %v37
  %v150 = vunpack.c.l.b16 %v38
  %v151 = vunpack.c.l.b16 %v39
  %v152 = vunpack.c.l.b16 %v40
  %v153 = vunpack.c.l.b16 %v41
  %v154 = vunpack.c.l.b16 %v42
  %v155 = vunpack.c.l.b16 %v43
  %v156 = vunpack.c.l.b16 %v44
  %v157 = vunpack.c.l.b16 %v45
  %v158 = vunpack.c.l.b16 %v46
  %v159 = vunpack.c.l.b16 %v47
  %v160 = vunpack.c.l.b16 %v48
  %v161 = vunpack.c.l.b16 %v49
  %v162 = vunpack.c.l.b16 %v50
  %v163 = vunpack.c.l.b16 %v51
  %v164 = vpack.c.b16 %v149, %v148
  %v165 = vpack.c.b16 %v151, %v150
  %v166 = vpack.c.b16 %v153, %v152
  %v167 = vpack.c.b16 %v155, %v154
  %v168 = vpack.c.b16 %v157, %v156
  %v169 = vpack.c.b16 %v159, %v158
  %v170 = vpack.c.b16 %v161, %v160
  %v171 = vpack.c.b16 %v163, %v162
  %180 = vmatpush.bf16.msra.mxu0 %v171
  %181 = vmatpush.bf16.msra.mxu0 %v170
  %182 = vmatpush.bf16.msra.mxu0 %v169
  %183 = vmatpush.bf16.msra.mxu0 %v168
  %184 = vmatpush.bf16.msra.mxu0 %v167
  %185 = vmatpush.bf16.msra.mxu0 %v166
  %186 = vmatpush.bf16.msra.mxu0 %v165
  %187 = vmatpush.bf16.msra.mxu0 %v164
  %188 = vmatmul.bf16.gmra.mxu0 %v116
  %v189 = vpop.f32.mrf.mxu0
  %v190 = vadd.f32 0.0, %v189
  %v191 = vpop.f32.mrf.mxu0
  %v192 = vadd.f32 0.0, %v191
  %193 = vmatmul.bf16.gmra.mxu0 %v117
  %v194 = vpop.f32.mrf.mxu0
  %v195 = vadd.f32 0.0, %v194
  %v196 = vpop.f32.mrf.mxu0
  %v197 = vadd.f32 0.0, %v196
  %198 = vmatmul.bf16.gmra.mxu0 %v118
  %v199 = vpop.f32.mrf.mxu0
  %v200 = vadd.f32 0.0, %v199
  %v201 = vpop.f32.mrf.mxu0
  %v202 = vadd.f32 0.0, %v201
  %203 = vmatmul.bf16.gmra.mxu0 %v119
  %v204 = vpop.f32.mrf.mxu0
  %v205 = vadd.f32 0.0, %v204
  %v206 = vpop.f32.mrf.mxu0
  %v207 = vadd.f32 0.0, %v206
  %208 = vmatmul.bf16.gmra.mxu0 %v120
  %v209 = vpop.f32.mrf.mxu0
  %v210 = vadd.f32 0.0, %v209
  %v211 = vpop.f32.mrf.mxu0
  %v212 = vadd.f32 0.0, %v211
  %213 = vmatmul.bf16.gmra.mxu0 %v121
  %v214 = vpop.f32.mrf.mxu0
  %v215 = vadd.f32 0.0, %v214
  %v216 = vpop.f32.mrf.mxu0
  %v217 = vadd.f32 0.0, %v216
  %218 = vmatmul.bf16.gmra.mxu0 %v122
  %v219 = vpop.f32.mrf.mxu0
  %v220 = vadd.f32 0.0, %v219
  %v221 = vpop.f32.mrf.mxu0
  %v222 = vadd.f32 0.0, %v221
  %223 = vmatmul.bf16.gmra.mxu0 %v123
  %v224 = vpop.f32.mrf.mxu0
  %v225 = vadd.f32 0.0, %v224
  %v226 = vpop.f32.mrf.mxu0
  %v227 = vadd.f32 0.0, %v226
  %228 = vdwg.mxu0
  %v229 = vadd.f32 %v52, %v190
  %v230 = vadd.f32 %v53, %v192
  %v231 = vadd.f32 %v54, %v195
  %v232 = vadd.f32 %v55, %v197
  %v233 = vadd.f32 %v56, %v200
  %v234 = vadd.f32 %v57, %v202
  %v235 = vadd.f32 %v58, %v205
  %v236 = vadd.f32 %v59, %v207
  %v237 = vadd.f32 %v60, %v210
  %v238 = vadd.f32 %v61, %v212
  %v239 = vadd.f32 %v62, %v215
  %v240 = vadd.f32 %v63, %v217
  %v241 = vadd.f32 %v64, %v220
  %v242 = vadd.f32 %v65, %v222
  %v243 = vadd.f32 %v66, %v225
  %v244 = vadd.f32 %v67, %v227
  %245 = vst [vmem:[#allocation2] sm:$0xff] %v229
  %246 = vst [vmem:[#allocation2 + $0x8] sm:$0xff] %v230
  %247 = vst [vmem:[#allocation2 + $0x10] sm:$0xff] %v231
  %248 = vst [vmem:[#allocation2 + $0x18] sm:$0xff] %v232
  %249 = vst [vmem:[#allocation2 + $0x20] sm:$0xff] %v233
  %250 = vst [vmem:[#allocation2 + $0x28] sm:$0xff] %v234
  %251 = vst [vmem:[#allocation2 + $0x30] sm:$0xff] %v235
  %252 = vst [vmem:[#allocation2 + $0x38] sm:$0xff] %v236
  %253 = vst [vmem:[#allocation2 + $0x40] sm:$0xff] %v237
  %254 = vst [vmem:[#allocation2 + $0x48] sm:$0xff] %v238
  %255 = vst [vmem:[#allocation2 + $0x50] sm:$0xff] %v239
  %256 = vst [vmem:[#allocation2 + $0x58] sm:$0xff] %v240
  %257 = vst [vmem:[#allocation2 + $0x60] sm:$0xff] %v241
  %258 = vst [vmem:[#allocation2 + $0x68] sm:$0xff] %v242
  %259 = vst [vmem:[#allocation2 + $0x70] sm:$0xff] %v243
  %260 = vst [vmem:[#allocation2 + $0x78] sm:$0xff] %v244
  // Predicated region
  $region14: #{gcn_apply.4} parent=0 // pred_check
    %p261 = pneg %p11
  $region15: #{gcn_apply.4} parent=0 // pred_check_branch
    %263 = sbr.rel (%p261) target = $region17
  $region16: #{gcn_apply.4} parent=0 // pred_region
    %v264 = vld [vmem:[#allocation2] sm:$0xff]
    %v265 = vld [vmem:[#allocation2 + $0x8] sm:$0xff]
    %v266 = vld [vmem:[#allocation2 + $0x10] sm:$0xff]
    %v267 = vld [vmem:[#allocation2 + $0x18] sm:$0xff]
    %v268 = vld [vmem:[#allocation2 + $0x20] sm:$0xff]
    %v269 = vld [vmem:[#allocation2 + $0x28] sm:$0xff]
    %v270 = vld [vmem:[#allocation2 + $0x30] sm:$0xff]
    %v271 = vld [vmem:[#allocation2 + $0x38] sm:$0xff]
    %v272 = vld [vmem:[#allocation2 + $0x40] sm:$0xff]
    %v273 = vld [vmem:[#allocation2 + $0x48] sm:$0xff]
    %v274 = vld [vmem:[#allocation2 + $0x50] sm:$0xff]
    %v275 = vld [vmem:[#allocation2 + $0x58] sm:$0xff]
    %v276 = vld [vmem:[#allocation2 + $0x60] sm:$0xff]
    %v277 = vld [vmem:[#allocation2 + $0x68] sm:$0xff]
    %v278 = vld [vmem:[#allocation2 + $0x70] sm:$0xff]
    %v279 = vld [vmem:[#allocation2 + $0x78] sm:$0xff]
    %v280 = vpack.c.bf16 %v264, %v264
    %v281 = vpack.c.bf16 %v265, %v265
    %v282 = vpack.c.bf16 %v266, %v266
    %v283 = vpack.c.bf16 %v267, %v267
    %v284 = vpack.c.bf16 %v268, %v268
    %v285 = vpack.c.bf16 %v269, %v269
    %v286 = vpack.c.bf16 %v270, %v270
    %v287 = vpack.c.bf16 %v271, %v271
    %v288 = vpack.c.bf16 %v272, %v272
    %v289 = vpack.c.bf16 %v273, %v273
    %v290 = vpack.c.bf16 %v274, %v274
    %v291 = vpack.c.bf16 %v275, %v275
    %v292 = vpack.c.bf16 %v276, %v276
    %v293 = vpack.c.bf16 %v277, %v277
    %v294 = vpack.c.bf16 %v278, %v278
    %v295 = vpack.c.bf16 %v279, %v279
    %296 = vst [vmem:[%s2] sm:$0xf] %v280
    %297 = vst [vmem:[%s2 + $0x4] sm:$0xf] %v281
    %298 = vst [vmem:[%s2 + $0x8] sm:$0xf] %v282
    %299 = vst [vmem:[%s2 + $0xc] sm:$0xf] %v283
    %300 = vst [vmem:[%s2 + $0x10] sm:$0xf] %v284
    %301 = vst [vmem:[%s2 + $0x14] sm:$0xf] %v285
    %302 = vst [vmem:[%s2 + $0x18] sm:$0xf] %v286
    %303 = vst [vmem:[%s2 + $0x1c] sm:$0xf] %v287
    %304 = vst [vmem:[%s2 + $0x20] sm:$0xf] %v288
    %305 = vst [vmem:[%s2 + $0x24] sm:$0xf] %v289
    %306 = vst [vmem:[%s2 + $0x28] sm:$0xf] %v290
    %307 = vst [vmem:[%s2 + $0x2c] sm:$0xf] %v291
    %308 = vst [vmem:[%s2 + $0x30] sm:$0xf] %v292
    %309 = vst [vmem:[%s2 + $0x34] sm:$0xf] %v293
    %310 = vst [vmem:[%s2 + $0x38] sm:$0xf] %v294
    %311 = vst [vmem:[%s2 + $0x3c] sm:$0xf] %v295
  $region17: #{gcn_apply.4} parent=0 // pred_fallthru
    _
  // Predicated region
  $region18: #{gcn_apply.4} parent=0 // pred_check
    _
  $region19: #{gcn_apply.4} parent=0 // pred_check_branch
    %313 = sbr.rel (0) target = $region21
  $region20: #{gcn_apply.4} parent=0 // pred_region
    _
  $region21: #{gcn_apply.4} parent=0 // pred_fallthru
    _
  // Predicated region
  $region22: #{gcn_apply.4} parent=0 // pred_check
    _
  $region23: #{gcn_apply.4} parent=0 // pred_check_branch
    %315 = sbr.rel (0) target = $region25
  $region24: #{gcn_apply.4} parent=0 // pred_region
    _
  $region25: #{gcn_apply.4} parent=0 // pred_fallthru
    _

</llo_original>
